<compile_context>
chip_gen: v6e
topology: v6e:2x2x1
jax: 0.10.0
libtpu: 0.0.40
codegen_flags: <defaults>
</compile_context>

<pallas_src>
import functools

import jax
import jax.numpy as jnp
from jax import lax
from jax.experimental import pallas as pl
from jax.experimental.pallas import tpu as pltpu


def _gelu(x, approximate):
    # approximate=True  -> tanh formulation (tanh issues on the EUP slot).
    # approximate=False -> exact erf (matches F.gelu's default numerics).
    if approximate:
        c = 0.7978845608028654  # sqrt(2/pi)
        return 0.5 * x * (1.0 + jnp.tanh(c * (x + 0.044715 * (x * x * x))))
    return 0.5 * x * (1.0 + lax.erf(x * 0.7071067811865476))


def _round_up(n, m):
    return ((n + m - 1) // m) * m


def _choose_tile(n, tm_cap=1024, min_steps=2):
    """Pick a token tile (multiple of 128) and padded token count.

    * >= `min_steps` grid steps whenever n > 128 (keeps both v7x TCs busy),
    * tile capped at `tm_cap` tokens (amortizes ~0.35us/step on v5e/v6e),
    * padding bounded to <128 extra tokens per step (no padding cliff).
    """
    tm_cap = max(128, _round_up(tm_cap, 128))
    if n <= 128:
        tm_eff = 128
    else:
        n_steps = max(min_steps, pl.cdiv(n, tm_cap))
        tm_eff = min(_round_up(pl.cdiv(n, n_steps), 128), tm_cap)
    n_pad = _round_up(n, tm_eff)
    return tm_eff, n_pad


def mlp_kernel(xt_ref, w0_ref, b0_ref, wm_ref, bm_ref, wf_ref, bf_ref,
               out_ref, *, num_mid, approximate_gelu):
    """One tile of `tm` tokens through the whole MLP, feature-major.

    xt_ref : (C, tm)            input tile, tokens on the lane axis
    w0_ref : (H, C)             first Linear weight, PyTorch (out, in)
    b0_ref : (H, 1)             first bias (column)
    wm_ref : (num_mid, H, H)    hidden Linear weights, PyTorch (out, in)
    bm_ref : (num_mid, H, 1)    hidden biases (columns)
    wf_ref : (O, H)             final Linear weight, PyTorch (out, in)
    bf_ref : (O, 1)             final bias (column)
    out_ref: (O, tm)            transposed output tile (lane-dense store)
    """
    h = jnp.dot(w0_ref[...], xt_ref[...],
                preferred_element_type=jnp.float32) + b0_ref[...]
    h = _gelu(h, approximate_gelu)
    for m in range(num_mid):                    # static, unrolled hidden layers
        h = jnp.dot(wm_ref[m], h,
                    preferred_element_type=jnp.float32) + bm_ref[m]
        h = _gelu(h, approximate_gelu)
    # No activation after the last layer (per the module spec).
    y_t = jnp.dot(wf_ref[...], h,
                  preferred_element_type=jnp.float32) + bf_ref[...]
    out_ref[...] = y_t.astype(out_ref.dtype)


def mlp_forward(x, params, *, tm_cap=1024, min_steps=2, approximate_gelu=True):
    """x: (..., input_dim) f32 -> (..., output_dim).

    params = (w0:(H,C), b0:(H,), wm:(num_mid,H,H), bm:(num_mid,H),
              wf:(O,H), bf:(O,))  -- all nn.Linear (out, in) oriented weights.
    approximate_gelu=True uses the tanh GELU (EUP, fastest); False uses exact
    erf (bit-matches F.gelu's default, slower VALU polynomial).
    """
    w0, b0, wm, bm, wf, bf = params
    c = x.shape[-1]
    lead = x.shape[:-1]
    H, O = w0.shape[0], wf.shape[0]
    num_mid = wm.shape[0]
    assert w0.shape == (H, c) and wf.shape == (O, H)
    assert wm.shape == (num_mid, H, H) and bm.shape == (num_mid, H)
    # TODO(synk): num_layers == 2 (no hidden layer) would need a zero-sized wm
    # stack, which this fused BlockSpec layout does not support.
    assert num_mid >= 1, "kernel expects num_layers >= 3"

    x_flat = x.reshape(-1, c)
    n = x_flat.shape[0]
    if n == 0:
        return jnp.zeros((*lead, O), x.dtype)

    tm_eff, n_pad = _choose_tile(n, tm_cap=tm_cap, min_steps=min_steps)
    if n_pad != n:
        x_flat = jnp.pad(x_flat, ((0, n_pad - n), (0, 0)))
    x_t = x_flat.T                              # (C, N_pad): tokens on lanes

    kernel = functools.partial(mlp_kernel, num_mid=num_mid,
                               approximate_gelu=approximate_gelu)
    out_t = pl.pallas_call(
        kernel,
        out_shape=jax.ShapeDtypeStruct((O, n_pad), jnp.float32),
        grid_spec=pltpu.PrefetchScalarGridSpec(
            num_scalar_prefetch=0,
            grid=(n_pad // tm_eff,),
            in_specs=[
                pl.BlockSpec((c, tm_eff), lambda i: (0, i)),         # x_t tile
                pl.BlockSpec((H, c), lambda i: (0, 0)),              # w0
                pl.BlockSpec((H, 1), lambda i: (0, 0)),              # b0
                pl.BlockSpec((num_mid, H, H), lambda i: (0, 0, 0)),  # wm
                pl.BlockSpec((num_mid, H, 1), lambda i: (0, 0, 0)),  # bm
                pl.BlockSpec((O, H), lambda i: (0, 0)),              # wf
                pl.BlockSpec((O, 1), lambda i: (0, 0)),              # bf
            ],
            out_specs=pl.BlockSpec((O, tm_eff), lambda i: (0, i)),
        ),
        compiler_params=pltpu.CompilerParams(
            dimension_semantics=("parallel",)),
    )(x_t, w0, b0.reshape(H, 1), wm, bm.reshape(num_mid, H, 1),
      wf, bf.reshape(O, 1))

    y = out_t[:, :n].T                          # (N, O); drop padded tokens
    return y.reshape(*lead, O)


def reference(x, params, approximate=False):
    """Pure-JAX reference of the PyTorch MLP forward."""
    w0, b0, wm, bm, wf, bf = params
    hp = lax.Precision.HIGHEST
    h = _gelu(jnp.dot(x, w0.T, precision=hp) + b0, approximate)
    for m in range(wm.shape[0]):
        h = _gelu(jnp.dot(h, wm[m].T, precision=hp) + bm[m], approximate)
    return jnp.dot(h, wf.T, precision=hp) + bf


if __name__ == "__main__":
    # Small shapes consistent with the module (e.g. a bbox-regression head):
    # batch=2, seq=100 queries, input 32, hidden 64, output 4, 3 layers.
    batch, seq = 2, 100
    input_dim, hidden_dim, output_dim, num_layers = 32, 64, 4, 3
    num_mid = num_layers - 2

    key = jax.random.PRNGKey(0)
    ks = jax.random.split(key, 7)

    x = jax.random.normal(ks[0], (batch, seq, input_dim), dtype=jnp.float32)

    # nn.Linear (out, in) weights / 1-D biases, used as-is by the kernel.
    w0 = jax.random.normal(ks[1], (hidden_dim, input_dim), jnp.float32) * 0.1
    b0 = jax.random.normal(ks[2], (hidden_dim,), jnp.float32) * 0.1
    wm = jax.random.normal(ks[3], (num_mid, hidden_dim, hidden_dim), jnp.float32) * 0.1
    bm = jax.random.normal(ks[4], (num_mid, hidden_dim), jnp.float32) * 0.1
    wf = jax.random.normal(ks[5], (output_dim, hidden_dim), jnp.float32) * 0.1
    bf = jax.random.normal(ks[6], (output_dim,), jnp.float32) * 0.1
    params = (w0, b0, wm, bm, wf, bf)

    # N = batch*seq = 200 -> tile 128, padded to 256, 2-step "parallel" grid
    # (both TensorCores busy on v7x; single extra step is negligible elsewhere).
    out = mlp_forward(x, params)                # default: tanh-approx GELU (EUP)
    out = jax.block_until_ready(out)
    assert out.shape == (batch, seq, output_dim), out.shape

    # 1) Kernel vs matched (tanh-GELU) reference: tight tolerance.
    ref_tanh = reference(x, params, approximate=True)
    err = float(jnp.max(jnp.abs(out - ref_tanh)))
    if err > 5e-4:
        raise AssertionError(f"kernel mismatch vs tanh-GELU reference: {err}")

    # 2) Kernel vs the module's exact-erf F.gelu semantics: approximation-level
    #    tolerance (tanh GELU deviates from exact by ~1e-3 at most here).
    ref_exact = reference(x, params, approximate=False)
    err_exact = float(jnp.max(jnp.abs(out - ref_exact)))
    if err_exact > 5e-3:
        raise AssertionError(f"kernel drifted from exact-GELU semantics: {err_exact}")

    print("KERNEL_OK")
</pallas_src>

<mosaic_0001>
module attributes {stable_mosaic.version = 11 : i64} {
  func.func @mlp_kernel(%arg0: i32, %arg1: memref<32x128xf32, #tpu.memory_space<vmem>>, %arg2: memref<64x32xf32, #tpu.memory_space<vmem>>, %arg3: memref<64x1xf32, #tpu.memory_space<vmem>>, %arg4: memref<1x64x64xf32, #tpu.memory_space<vmem>>, %arg5: memref<1x64x1xf32, #tpu.memory_space<vmem>>, %arg6: memref<4x64xf32, #tpu.memory_space<vmem>>, %arg7: memref<4x1xf32, #tpu.memory_space<vmem>>, %arg8: memref<4x128xf32, #tpu.memory_space<vmem>>) attributes {dimension_semantics = [#tpu.dimension_semantics<parallel>], iteration_bounds = array<i64: 2>, scalar_prefetch = 0 : i64, scratch_operands = 0 : i64, tpu.core_type = #tpu.core_type<tc>, window_params = [{transform_indices = @transform_0, window_bounds = array<i64: 32, 128>}, {pipeline_mode = #tpu.pipeline_mode<synchronous>, transform_indices = @transform_1, window_bounds = array<i64: 64, 32>}, {pipeline_mode = #tpu.pipeline_mode<synchronous>, transform_indices = @transform_2, window_bounds = array<i64: 64, 1>}, {pipeline_mode = #tpu.pipeline_mode<synchronous>, transform_indices = @transform_3, window_bounds = array<i64: 1, 64, 64>}, {pipeline_mode = #tpu.pipeline_mode<synchronous>, transform_indices = @transform_4, window_bounds = array<i64: 1, 64, 1>}, {pipeline_mode = #tpu.pipeline_mode<synchronous>, transform_indices = @transform_5, window_bounds = array<i64: 4, 64>}, {pipeline_mode = #tpu.pipeline_mode<synchronous>, transform_indices = @transform_6, window_bounds = array<i64: 4, 1>}, {transform_indices = @transform_7, window_bounds = array<i64: 4, 128>}]} {
    %c0 = arith.constant 0 : index
    %c0_0 = arith.constant 0 : index
    %0 = vector.load %arg2[%c0, %c0_0] : memref<64x32xf32, #tpu.memory_space<vmem>>, vector<64x32xf32>
    %c0_1 = arith.constant 0 : index
    %c0_2 = arith.constant 0 : index
    %1 = vector.load %arg1[%c0_1, %c0_2] : memref<32x128xf32, #tpu.memory_space<vmem>>, vector<32x128xf32>
    %cst = arith.constant dense<0.000000e+00> : vector<64x128xf32>
    %2 = tpu.matmul %0, %1, %cst {dimension_numbers = #tpu.dot_dimension_numbers<[1], [0], [0], [1], [0, 0, 1, 1], [], []>} : vector<64x32xf32>, vector<32x128xf32>, vector<64x128xf32> -> vector<64x128xf32>
    %c0_3 = arith.constant 0 : index
    %c0_4 = arith.constant 0 : index
    %3 = vector.load %arg3[%c0_3, %c0_4] : memref<64x1xf32, #tpu.memory_space<vmem>>, vector<64x1xf32>
    %4 = vector.broadcast %3 : vector<64x1xf32> to vector<64x128xf32>
    %5 = arith.addf %2, %4 : vector<64x128xf32>
    %cst_5 = arith.constant 5.000000e-01 : f32
    %6 = vector.broadcast %cst_5 : f32 to vector<64x128xf32>
    %7 = arith.mulf %6, %5 : vector<64x128xf32>
    %8 = arith.mulf %5, %5 : vector<64x128xf32>
    %9 = arith.mulf %8, %5 : vector<64x128xf32>
    %cst_6 = arith.constant 4.471500e-02 : f32
    %10 = vector.broadcast %cst_6 : f32 to vector<64x128xf32>
    %11 = arith.mulf %10, %9 : vector<64x128xf32>
    %12 = arith.addf %5, %11 : vector<64x128xf32>
    %cst_7 = arith.constant 0.797884583 : f32
    %13 = vector.broadcast %cst_7 : f32 to vector<64x128xf32>
    %14 = arith.mulf %13, %12 : vector<64x128xf32>
    %15 = math.tanh %14 : vector<64x128xf32>
    %cst_8 = arith.constant 1.000000e+00 : f32
    %16 = vector.broadcast %cst_8 : f32 to vector<64x128xf32>
    %17 = arith.addf %16, %15 : vector<64x128xf32>
    %18 = arith.mulf %7, %17 : vector<64x128xf32>
    %c0_9 = arith.constant 0 : index
    %c0_10 = arith.constant 0 : index
    %c0_11 = arith.constant 0 : index
    %19 = vector.load %arg4[%c0_9, %c0_10, %c0_11] : memref<1x64x64xf32, #tpu.memory_space<vmem>>, vector<1x64x64xf32>
    %20 = vector.shape_cast %19 : vector<1x64x64xf32> to vector<64x64xf32>
    %cst_12 = arith.constant dense<0.000000e+00> : vector<64x128xf32>
    %21 = tpu.matmul %20, %18, %cst_12 {dimension_numbers = #tpu.dot_dimension_numbers<[1], [0], [0], [1], [0, 0, 1, 1], [], []>} : vector<64x64xf32>, vector<64x128xf32>, vector<64x128xf32> -> vector<64x128xf32>
    %c0_13 = arith.constant 0 : index
    %c0_14 = arith.constant 0 : index
    %c0_15 = arith.constant 0 : index
    %22 = vector.load %arg5[%c0_13, %c0_14, %c0_15] : memref<1x64x1xf32, #tpu.memory_space<vmem>>, vector<1x64x1xf32>
    %23 = vector.shape_cast %22 : vector<1x64x1xf32> to vector<64x1xf32>
    %24 = vector.broadcast %23 : vector<64x1xf32> to vector<64x128xf32>
    %25 = arith.addf %21, %24 : vector<64x128xf32>
    %cst_16 = arith.constant 5.000000e-01 : f32
    %26 = vector.broadcast %cst_16 : f32 to vector<64x128xf32>
    %27 = arith.mulf %26, %25 : vector<64x128xf32>
    %28 = arith.mulf %25, %25 : vector<64x128xf32>
    %29 = arith.mulf %28, %25 : vector<64x128xf32>
    %cst_17 = arith.constant 4.471500e-02 : f32
    %30 = vector.broadcast %cst_17 : f32 to vector<64x128xf32>
    %31 = arith.mulf %30, %29 : vector<64x128xf32>
    %32 = arith.addf %25, %31 : vector<64x128xf32>
    %cst_18 = arith.constant 0.797884583 : f32
    %33 = vector.broadcast %cst_18 : f32 to vector<64x128xf32>
    %34 = arith.mulf %33, %32 : vector<64x128xf32>
    %35 = math.tanh %34 : vector<64x128xf32>
    %cst_19 = arith.constant 1.000000e+00 : f32
    %36 = vector.broadcast %cst_19 : f32 to vector<64x128xf32>
    %37 = arith.addf %36, %35 : vector<64x128xf32>
    %38 = arith.mulf %27, %37 : vector<64x128xf32>
    %c0_20 = arith.constant 0 : index
    %c0_21 = arith.constant 0 : index
    %39 = vector.load %arg6[%c0_20, %c0_21] : memref<4x64xf32, #tpu.memory_space<vmem>>, vector<4x64xf32>
    %cst_22 = arith.constant dense<0.000000e+00> : vector<4x128xf32>
    %40 = tpu.matmul %39, %38, %cst_22 {dimension_numbers = #tpu.dot_dimension_numbers<[1], [0], [0], [1], [0, 0, 1, 1], [], []>} : vector<4x64xf32>, vector<64x128xf32>, vector<4x128xf32> -> vector<4x128xf32>
    %c0_23 = arith.constant 0 : index
    %c0_24 = arith.constant 0 : index
    %41 = vector.load %arg7[%c0_23, %c0_24] : memref<4x1xf32, #tpu.memory_space<vmem>>, vector<4x1xf32>
    %42 = vector.broadcast %41 : vector<4x1xf32> to vector<4x128xf32>
    %43 = arith.addf %40, %42 : vector<4x128xf32>
    %c0_25 = arith.constant 0 : index
    %c0_26 = arith.constant 0 : index
    %44 = vector.load %arg8[%c0_25, %c0_26] : memref<4x128xf32, #tpu.memory_space<vmem>>, vector<4x128xf32>
    tpu.vector_store %arg8[%c0_25, %c0_26], %43 {strides = array<i32>} : memref<4x128xf32, #tpu.memory_space<vmem>>, vector<4x128xf32>,
    return
  }
  func.func @transform_0(%arg0: i32) -> (i32, i32) {
    %c0_i32 = arith.constant 0 : i32
    %c0_i32_0 = arith.constant 0 : i32
    return %c0_i32, %arg0 : i32, i32
  }
  func.func @transform_1(%arg0: i32) -> (i32, i32) {
    %c0_i32 = arith.constant 0 : i32
    %c0_i32_0 = arith.constant 0 : i32
    %c0_i32_1 = arith.constant 0 : i32
    return %c0_i32, %c0_i32_0 : i32, i32
  }
  func.func @transform_2(%arg0: i32) -> (i32, i32) {
    %c0_i32 = arith.constant 0 : i32
    %c0_i32_0 = arith.constant 0 : i32
    %c0_i32_1 = arith.constant 0 : i32
    return %c0_i32, %c0_i32_0 : i32, i32
  }
  func.func @transform_3(%arg0: i32) -> (i32, i32, i32) {
    %c0_i32 = arith.constant 0 : i32
    %c0_i32_0 = arith.constant 0 : i32
    %c0_i32_1 = arith.constant 0 : i32
    %c0_i32_2 = arith.constant 0 : i32
    return %c0_i32, %c0_i32_0, %c0_i32_1 : i32, i32, i32
  }
  func.func @transform_4(%arg0: i32) -> (i32, i32, i32) {
    %c0_i32 = arith.constant 0 : i32
    %c0_i32_0 = arith.constant 0 : i32
    %c0_i32_1 = arith.constant 0 : i32
    %c0_i32_2 = arith.constant 0 : i32
    return %c0_i32, %c0_i32_0, %c0_i32_1 : i32, i32, i32
  }
  func.func @transform_5(%arg0: i32) -> (i32, i32) {
    %c0_i32 = arith.constant 0 : i32
    %c0_i32_0 = arith.constant 0 : i32
    %c0_i32_1 = arith.constant 0 : i32
    return %c0_i32, %c0_i32_0 : i32, i32
  }
  func.func @transform_6(%arg0: i32) -> (i32, i32) {
    %c0_i32 = arith.constant 0 : i32
    %c0_i32_0 = arith.constant 0 : i32
    %c0_i32_1 = arith.constant 0 : i32
    return %c0_i32, %c0_i32_0 : i32, i32
  }
  func.func @transform_7(%arg0: i32) -> (i32, i32) {
    %c0_i32 = arith.constant 0 : i32
    %c0_i32_0 = arith.constant 0 : i32
    return %c0_i32, %arg0 : i32, i32
  }
}

</mosaic_0001>

<llo_original>
// kernel: tpu_custom_call.1
$region0: #{tpu_custom_call.1}
  #allocation0 [shape = 'u32[]', space=smem, size = 0x4, offset = 0x4, fixed_abs, tag = 'smem constant byte address 0x4 - core index']
  #allocation1 [shape = 'u32[144,128]{1,0:T(1,128)}', space=vmem, size = 0x12000, scoped, tag = 'internal scratch']
  %s0 = inlined_call_operand.vmem [shape: f32[32,256], index: 0, kind: input, shape index: {}]
  %s1 = inlined_call_operand.vmem [shape: f32[64,32], index: 1, kind: input, shape index: {}]
  %s2 = inlined_call_operand.vmem [shape: f32[64,1], index: 2, kind: input, shape index: {}]
  %s3 = inlined_call_operand.vmem [shape: f32[1,64,64], index: 3, kind: input, shape index: {}]
  %s4 = inlined_call_operand.vmem [shape: f32[1,64,1], index: 4, kind: input, shape index: {}]
  %s5 = inlined_call_operand.vmem [shape: f32[4,64], index: 5, kind: input, shape index: {}]
  %s6 = inlined_call_operand.vmem [shape: f32[4,1], index: 6, kind: input, shape index: {}]
  %s7 = inlined_call_operand.hbm [shape: f32[4,256], index: 7, kind: output, shape index: {}]
  %s8 = sld [smem:[#allocation0]]
  $region99: #{tpu_custom_call.1} parent=0
    _
  %s10 = ssub.s32 1, %s8
  %s11 = scalar_select 0, %s10, %s8
  $region1: #{tpu_custom_call.1} parent=0
    #allocation2 [shape = 'u8[32768]{0}', space=vmem, size = 0x8000, scoped, tag = 'input window, operand 0']
    #allocation3 [shape = 'u8[4096]{0}', space=vmem, size = 0x1000, scoped, tag = 'output window, operand 0']
    #allocation4 [shape = 's32[2]{0}', space=sflag, size = 0x8, scoped, tag = 'scoped memory for tpu_custom_call.1']
    %12 = vsyncpa [#allocation4], 0
    %s13 = scalar_lea.sflag [#allocation4], 1
    %14 = vsyncpa %s13, 0
    loop: start=0, step=1, limit=4
    $region2: #{tpu_custom_call.1} parent=1 // loop_pre_header
      _
    $region3: #{tpu_custom_call.1} parent=1 // loop_header
      %s16 = sphi 0, %s20
      %p17 = scmp.ge.s32.totalorder %s16, 4
      %s26 = sphi 0, %s28
      %s29 = sphi 0, %s26
      %s30 = sphi 0, %s29
      %s46 = sphi 0, %s30
      %s50 = sphi 0, %s50
      %s52 = sphi 0, %s50
      %s53 = sphi 0, %s52
      %s67 = sphi 0, %s53
      %s71 = sphi 0, %s71
      %s73 = sphi 0, %s71
      %s74 = sphi 0, %s73
      %s88 = sphi 0, %s74
      %s92 = sphi 0, %s92
      %s94 = sphi 0, %s92
      %s95 = sphi 0, %s94
      %s109 = sphi 0, %s95
      %s113 = sphi 0, %s113
      %s115 = sphi 0, %s113
      %s116 = sphi 0, %s115
      %s130 = sphi 0, %s116
      %s134 = sphi 0, %s134
      %s136 = sphi 0, %s134
      %s137 = sphi 0, %s136
      %s151 = sphi 0, %s137
      %s155 = sphi 0, %s155
      %s157 = sphi 0, %s155
      %s158 = sphi 0, %s157
      %s172 = sphi 0, %s158
      %s178 = sphi 0, %s180
      %s181 = sphi 0, %s178
      %s182 = sphi 0, %s181
      %s198 = sphi 0, %s182
    $region4: #{tpu_custom_call.1} parent=1 // loop_header_branch
      %19 = sbr.rel (%p17) target = $region8
    $region5: #{tpu_custom_call.1} parent=1 // loop_body
      %s21 = ssub.s32 %s16, 1
      %s22 = ssub.s32 %s16, 2
      %s23 = sadd.s32 %s16, 1
      %s24 = ssub.s32 %s16, %s23
      %p25 = scmp.eq.s32.totalorder %s24, 0
      %s27 = sadd.s32 %s26, 1
      %s28 = scalar_select %p25, %s26, %s27
      %p31 = pneg %p25
      %p32 = scmp.eq.s32.totalorder %s16, 1
      %p33 = por %p31, %p32
      %p34 = scmp.ne.s32.totalorder %s26, %s29
      %p35 = scmp.eq.s32.totalorder %s16, 0
      %p36 = por %p34, %p35
      %p37 = scmp.ne.s32.totalorder %s26, %s29
      %p38 = scmp.eq.s32.totalorder %s21, 1
      %p39 = por %p37, %p38
      %p40 = scmp.ne.s32.totalorder %s29, %s30
      %p41 = scmp.eq.s32.totalorder %s21, 0
      %p42 = por %p40, %p41
      %p43 = scmp.ne.s32.totalorder %s29, %s30
      %p44 = scmp.eq.s32.totalorder %s22, 1
      %p45 = por %p43, %p44
      %p47 = scmp.ne.s32.totalorder %s30, %s46
      %p48 = scmp.eq.s32.totalorder %s22, 0
      %p49 = por %p47, %p48
      %s51 = sadd.s32 %s50, 1
      %p54 = scmp.eq.s32.totalorder %s16, 1
      %p55 = scmp.ne.s32.totalorder %s50, %s52
      %p56 = scmp.eq.s32.totalorder %s16, 0
      %p57 = por %p55, %p56
      %p58 = scmp.ne.s32.totalorder %s50, %s52
      %p59 = scmp.eq.s32.totalorder %s21, 1
      %p60 = por %p58, %p59
      %p61 = scmp.ne.s32.totalorder %s52, %s53
      %p62 = scmp.eq.s32.totalorder %s21, 0
      %p63 = por %p61, %p62
      %p64 = scmp.ne.s32.totalorder %s52, %s53
      %p65 = scmp.eq.s32.totalorder %s22, 1
      %p66 = por %p64, %p65
      %p68 = scmp.ne.s32.totalorder %s53, %s67
      %p69 = scmp.eq.s32.totalorder %s22, 0
      %p70 = por %p68, %p69
      %s72 = sadd.s32 %s71, 1
      %p75 = scmp.eq.s32.totalorder %s16, 1
      %p76 = scmp.ne.s32.totalorder %s71, %s73
      %p77 = scmp.eq.s32.totalorder %s16, 0
      %p78 = por %p76, %p77
      %p79 = scmp.ne.s32.totalorder %s71, %s73
      %p80 = scmp.eq.s32.totalorder %s21, 1
      %p81 = por %p79, %p80
      %p82 = scmp.ne.s32.totalorder %s73, %s74
      %p83 = scmp.eq.s32.totalorder %s21, 0
      %p84 = por %p82, %p83
      %p85 = scmp.ne.s32.totalorder %s73, %s74
      %p86 = scmp.eq.s32.totalorder %s22, 1
      %p87 = por %p85, %p86
      %p89 = scmp.ne.s32.totalorder %s74, %s88
      %p90 = scmp.eq.s32.totalorder %s22, 0
      %p91 = por %p89, %p90
      %s93 = sadd.s32 %s92, 1
      %p96 = scmp.eq.s32.totalorder %s16, 1
      %p97 = scmp.ne.s32.totalorder %s92, %s94
      %p98 = scmp.eq.s32.totalorder %s16, 0
      %p99 = por %p97, %p98
      %p100 = scmp.ne.s32.totalorder %s92, %s94
      %p101 = scmp.eq.s32.totalorder %s21, 1
      %p102 = por %p100, %p101
      %p103 = scmp.ne.s32.totalorder %s94, %s95
      %p104 = scmp.eq.s32.totalorder %s21, 0
      %p105 = por %p103, %p104
      %p106 = scmp.ne.s32.totalorder %s94, %s95
      %p107 = scmp.eq.s32.totalorder %s22, 1
      %p108 = por %p106, %p107
      %p110 = scmp.ne.s32.totalorder %s95, %s109
      %p111 = scmp.eq.s32.totalorder %s22, 0
      %p112 = por %p110, %p111
      %s114 = sadd.s32 %s113, 1
      %p117 = scmp.eq.s32.totalorder %s16, 1
      %p118 = scmp.ne.s32.totalorder %s113, %s115
      %p119 = scmp.eq.s32.totalorder %s16, 0
      %p120 = por %p118, %p119
      %p121 = scmp.ne.s32.totalorder %s113, %s115
      %p122 = scmp.eq.s32.totalorder %s21, 1
      %p123 = por %p121, %p122
      %p124 = scmp.ne.s32.totalorder %s115, %s116
      %p125 = scmp.eq.s32.totalorder %s21, 0
      %p126 = por %p124, %p125
      %p127 = scmp.ne.s32.totalorder %s115, %s116
      %p128 = scmp.eq.s32.totalorder %s22, 1
      %p129 = por %p127, %p128
      %p131 = scmp.ne.s32.totalorder %s116, %s130
      %p132 = scmp.eq.s32.totalorder %s22, 0
      %p133 = por %p131, %p132
      %s135 = sadd.s32 %s134, 1
      %p138 = scmp.eq.s32.totalorder %s16, 1
      %p139 = scmp.ne.s32.totalorder %s134, %s136
      %p140 = scmp.eq.s32.totalorder %s16, 0
      %p141 = por %p139, %p140
      %p142 = scmp.ne.s32.totalorder %s134, %s136
      %p143 = scmp.eq.s32.totalorder %s21, 1
      %p144 = por %p142, %p143
      %p145 = scmp.ne.s32.totalorder %s136, %s137
      %p146 = scmp.eq.s32.totalorder %s21, 0
      %p147 = por %p145, %p146
      %p148 = scmp.ne.s32.totalorder %s136, %s137
      %p149 = scmp.eq.s32.totalorder %s22, 1
      %p150 = por %p148, %p149
      %p152 = scmp.ne.s32.totalorder %s137, %s151
      %p153 = scmp.eq.s32.totalorder %s22, 0
      %p154 = por %p152, %p153
      %s156 = sadd.s32 %s155, 1
      %p159 = scmp.eq.s32.totalorder %s16, 1
      %p160 = scmp.ne.s32.totalorder %s155, %s157
      %p161 = scmp.eq.s32.totalorder %s16, 0
      %p162 = por %p160, %p161
      %p163 = scmp.ne.s32.totalorder %s155, %s157
      %p164 = scmp.eq.s32.totalorder %s21, 1
      %p165 = por %p163, %p164
      %p166 = scmp.ne.s32.totalorder %s157, %s158
      %p167 = scmp.eq.s32.totalorder %s21, 0
      %p168 = por %p166, %p167
      %p169 = scmp.ne.s32.totalorder %s157, %s158
      %p170 = scmp.eq.s32.totalorder %s22, 1
      %p171 = por %p169, %p170
      %p173 = scmp.ne.s32.totalorder %s158, %s172
      %p174 = scmp.eq.s32.totalorder %s22, 0
      %p175 = por %p173, %p174
      %s176 = ssub.s32 %s16, %s23
      %p177 = scmp.eq.s32.totalorder %s176, 0
      %s179 = sadd.s32 %s178, 1
      %s180 = scalar_select %p177, %s178, %s179
      %p183 = pneg %p177
      %p184 = scmp.eq.s32.totalorder %s16, 1
      %p185 = por %p183, %p184
      %p186 = scmp.ne.s32.totalorder %s178, %s181
      %p187 = scmp.eq.s32.totalorder %s16, 0
      %p188 = por %p186, %p187
      %p189 = scmp.ne.s32.totalorder %s178, %s181
      %p190 = scmp.eq.s32.totalorder %s21, 1
      %p191 = por %p189, %p190
      %p192 = scmp.ne.s32.totalorder %s181, %s182
      %p193 = scmp.eq.s32.totalorder %s21, 0
      %p194 = por %p192, %p193
      %p195 = scmp.ne.s32.totalorder %s181, %s182
      %p196 = scmp.eq.s32.totalorder %s22, 1
      %p197 = por %p195, %p196
      %p199 = scmp.ne.s32.totalorder %s182, %s198
      %p200 = scmp.eq.s32.totalorder %s22, 0
      %p201 = por %p199, %p200
      %p202 = scmp.le.s32.totalorder 1, %s16
      %p203 = scmp.lt.s32.totalorder %s16, 3
      %p204 = pnand %p202, %p203
      %p205 = pneg %p204
      // Predicated region
      $region9: #{tpu_custom_call.1} parent=5 // pred_check
        _
      $region10: #{tpu_custom_call.1} parent=5 // pred_check_branch
        %207 = sbr.rel (%p204) target = $region12
      $region11: #{tpu_custom_call.1} parent=5 // pred_region
        %s208 = ssub.s32 %s16, 1
        // Predicated region
        $region13: #{tpu_custom_call.1} parent=11 // pred_check
          %p209 = pneg %p63
        $region14: #{tpu_custom_call.1} parent=11 // pred_check_branch
          %211 = sbr.rel (%p209) target = $region16
        $region15: #{tpu_custom_call.1} parent=11 // pred_region
          _
        $region16: #{tpu_custom_call.1} parent=11 // pred_fallthru
          _
        // Predicated region
        $region17: #{tpu_custom_call.1} parent=11 // pred_check
          %p212 = pneg %p84
        $region18: #{tpu_custom_call.1} parent=11 // pred_check_branch
          %214 = sbr.rel (%p212) target = $region20
        $region19: #{tpu_custom_call.1} parent=11 // pred_region
          _
        $region20: #{tpu_custom_call.1} parent=11 // pred_fallthru
          _
        // Predicated region
        $region21: #{tpu_custom_call.1} parent=11 // pred_check
          %p215 = pneg %p105
        $region22: #{tpu_custom_call.1} parent=11 // pred_check_branch
          %217 = sbr.rel (%p215) target = $region24
        $region23: #{tpu_custom_call.1} parent=11 // pred_region
          _
        $region24: #{tpu_custom_call.1} parent=11 // pred_fallthru
          _
        // Predicated region
        $region25: #{tpu_custom_call.1} parent=11 // pred_check
          %p218 = pneg %p126
        $region26: #{tpu_custom_call.1} parent=11 // pred_check_branch
          %220 = sbr.rel (%p218) target = $region28
        $region27: #{tpu_custom_call.1} parent=11 // pred_region
          _
        $region28: #{tpu_custom_call.1} parent=11 // pred_fallthru
          _
        // Predicated region
        $region29: #{tpu_custom_call.1} parent=11 // pred_check
          %p221 = pneg %p147
        $region30: #{tpu_custom_call.1} parent=11 // pred_check_branch
          %223 = sbr.rel (%p221) target = $region32
        $region31: #{tpu_custom_call.1} parent=11 // pred_region
          _
        $region32: #{tpu_custom_call.1} parent=11 // pred_fallthru
          _
        // Predicated region
        $region33: #{tpu_custom_call.1} parent=11 // pred_check
          %p224 = pneg %p168
        $region34: #{tpu_custom_call.1} parent=11 // pred_check_branch
          %226 = sbr.rel (%p224) target = $region36
        $region35: #{tpu_custom_call.1} parent=11 // pred_region
          _
        $region36: #{tpu_custom_call.1} parent=11 // pred_fallthru
          _
      $region12: #{tpu_custom_call.1} parent=5 // pred_fallthru
        _
      %p227 = scmp.lt.s32.totalorder %s16, 2
      // Predicated region
      $region37: #{tpu_custom_call.1} parent=5 // pred_check
        %p228 = pneg %p227
      $region38: #{tpu_custom_call.1} parent=5 // pred_check_branch
        %230 = sbr.rel (%p228) target = $region40
      $region39: #{tpu_custom_call.1} parent=5 // pred_region
        // Predicated region
        $region41: #{tpu_custom_call.1} parent=39 // pred_check
          %p231 = pneg %p36
        $region42: #{tpu_custom_call.1} parent=39 // pred_check_branch
          %233 = sbr.rel (%p231) target = $region44
        $region43: #{tpu_custom_call.1} parent=39 // pred_region
          %s234 = sand.u32 %s26, 1
          %s235 = sand.u32 %s26, 1
          %s236 = smul.addr %s235, 32
          %s237 = scalar_lea.vmem [#allocation2], %s236
          %s238 = smul.addr %s16, 8
          %s239 = scalar_lea.vmem %s0, %s238
          // Predicated region
          $region45: #{tpu_custom_call.1} parent=43 // pred_check
            _
          $region46: #{tpu_custom_call.1} parent=43 // pred_check_branch
            %241 = sbr.rel (0) target = $region48
          $region47: #{tpu_custom_call.1} parent=43 // pred_region
            // Predicated region
            $region49: #{tpu_custom_call.1} parent=47 // pred_check
              _
            $region50: #{tpu_custom_call.1} parent=47 // pred_check_branch
              %243 = sbr.rel (0) target = $region52
            $region51: #{tpu_custom_call.1} parent=47 // pred_region
              // Predicated region
              $region64: #{tpu_custom_call.1} parent=51 // pred_check
                _
              $region65: #{tpu_custom_call.1} parent=51 // pred_check_branch
                %265 = sbr.rel (0) target = $region67
              $region66: #{tpu_custom_call.1} parent=51 // pred_region
                loop: start=0, step=1, limit=1
                $region68: #{tpu_custom_call.1} parent=66 // loop_pre_header
                  _
                $region69: #{tpu_custom_call.1} parent=66 // loop_header
                  %s267 = sphi 0, %s271
                  %p268 = scmp.ge.s32.totalorder %s267, 1
                  %s272 = sphi %s239, %s239
                  %s273 = sphi %s237, %s237
                $region70: #{tpu_custom_call.1} parent=66 // loop_header_branch
                  %270 = sbr.rel (%p268) target = $region74
                $region71: #{tpu_custom_call.1} parent=66 // loop_body
                  %v274 = vld [vmem:[%s272] sm:$0xff]
                  %275 = vst [vmem:[%s273] sm:$0xff] %v274
                  %v276 = vld [vmem:[%s272 + $0x10] sm:$0xff]
                  %277 = vst [vmem:[%s273 + $0x8] sm:$0xff] %v276
                  %v278 = vld [vmem:[%s272 + $0x20] sm:$0xff]
                  %279 = vst [vmem:[%s273 + $0x10] sm:$0xff] %v278
                  %v280 = vld [vmem:[%s272 + $0x30] sm:$0xff]
                  %281 = vst [vmem:[%s273 + $0x18] sm:$0xff] %v280
                $region72: #{tpu_custom_call.1} parent=66 // loop_footer
                  %s271 = sadd.s32 1, %s267
                $region73: #{tpu_custom_call.1} parent=66 // loop_footer_branch
                  %266 = sbr.rel target = $region69
                $region74: #{tpu_custom_call.1} parent=66 // loop_exit
                  _
              $region67: #{tpu_custom_call.1} parent=51 // pred_fallthru
                _
              // Predicated region
              $region75: #{tpu_custom_call.1} parent=51 // pred_check
                _
              $region76: #{tpu_custom_call.1} parent=51 // pred_check_branch
                %283 = sbr.rel target = $region78
              $region77: #{tpu_custom_call.1} parent=51 // pred_region
                _
              $region78: #{tpu_custom_call.1} parent=51 // pred_fallthru
                _
            $region52: #{tpu_custom_call.1} parent=47 // pred_fallthru
              _
            // Predicated region
            $region53: #{tpu_custom_call.1} parent=47 // pred_check
              _
            $region54: #{tpu_custom_call.1} parent=47 // pred_check_branch
              %245 = sbr.rel target = $region56
            $region55: #{tpu_custom_call.1} parent=47 // pred_region
              %s247 = ssub.s32 256, 1
              loop: start=0, step=1, limit=1
              $region57: #{tpu_custom_call.1} parent=55 // loop_pre_header
                _
              $region58: #{tpu_custom_call.1} parent=55 // loop_header
                %s249 = sphi 0, %s253
                %p250 = scmp.ge.s32.totalorder %s249, 1
                %s254 = sphi %s239, %s239
                %s255 = sphi %s237, %s237
              $region59: #{tpu_custom_call.1} parent=55 // loop_header_branch
                %252 = sbr.rel (%p250) target = $region63
              $region60: #{tpu_custom_call.1} parent=55 // loop_body
                %v256 = vld [vmem:[%s254] sm:%s247]
                %257 = vst [vmem:[%s255] sm:%s247] %v256
                %v258 = vld [vmem:[%s254 + $0x10] sm:%s247]
                %259 = vst [vmem:[%s255 + $0x8] sm:%s247] %v258
                %v260 = vld [vmem:[%s254 + $0x20] sm:%s247]
                %261 = vst [vmem:[%s255 + $0x10] sm:%s247] %v260
                %v262 = vld [vmem:[%s254 + $0x30] sm:%s247]
                %263 = vst [vmem:[%s255 + $0x18] sm:%s247] %v262
              $region61: #{tpu_custom_call.1} parent=55 // loop_footer
                %s253 = sadd.s32 1, %s249
              $region62: #{tpu_custom_call.1} parent=55 // loop_footer_branch
                %248 = sbr.rel target = $region58
              $region63: #{tpu_custom_call.1} parent=55 // loop_exit
                _
            $region56: #{tpu_custom_call.1} parent=47 // pred_fallthru
              _
          $region48: #{tpu_custom_call.1} parent=43 // pred_fallthru
            _
          %284 = vnop
        $region44: #{tpu_custom_call.1} parent=39 // pred_fallthru
          _
      $region40: #{tpu_custom_call.1} parent=5 // pred_fallthru
        _
      %p285 = scmp.le.s32.totalorder 1, %s16
      %p286 = scmp.lt.s32.totalorder %s16, 3
      %p287 = pnand %p285, %p286
      %p288 = pneg %p287
      // Predicated region
      $region79: #{tpu_custom_call.1} parent=5 // pred_check
        _
      $region80: #{tpu_custom_call.1} parent=5 // pred_check_branch
        %290 = sbr.rel (%p287) target = $region82
      $region81: #{tpu_custom_call.1} parent=5 // pred_region
        %s291 = ssub.s32 %s16, 1
        %s292 = sand.u32 %s29, 1
        %s293 = sand.u32 %s29, 1
        %s294 = smul.addr %s293, 32
        %s295 = scalar_lea.vmem [#allocation2], %s294
        // Predicated region
        $region83: #{tpu_custom_call.1} parent=81 // pred_check
          %p296 = pneg %p42
        $region84: #{tpu_custom_call.1} parent=81 // pred_check_branch
          %298 = sbr.rel (%p296) target = $region86
        $region85: #{tpu_custom_call.1} parent=81 // pred_region
          _
        $region86: #{tpu_custom_call.1} parent=81 // pred_fallthru
          _
        %s299 = sand.u32 %s29, 1
        %s300 = sand.u32 %s29, 1
        %s301 = smul.addr %s300, 32
        %s302 = scalar_lea.vmem [#allocation2], %s301
        %p303 = pneg %p42
        %p304 = pneg %p39
        %p305 = pneg %p63
        %p306 = pneg %p60
        %p307 = pneg %p84
        %p308 = pneg %p81
        %p309 = pneg %p105
        %p310 = pneg %p102
        %p311 = pneg %p126
        %p312 = pneg %p123
        %p313 = pneg %p147
        %p314 = pneg %p144
        %p315 = pneg %p168
        %p316 = pneg %p165
        %p317 = pneg %p194
        %p318 = pneg %p191
        %s319 = sand.u32 %s181, 1
        %s320 = scalar_lea.sflag [#allocation4], %s319
        %s321 = sand.u32 %s181, 1
        %s322 = smul.addr %s321, 4
        %s323 = scalar_lea.vmem [#allocation3], %s322
        %v324 = vld [vmem:[%s1] sm:$0xff]
        %v325 = vld [vmem:[%s1 + $0x8] sm:$0xff]
        %v326 = vld [vmem:[%s1 + $0x10] sm:$0xff]
        %v327 = vld [vmem:[%s1 + $0x18] sm:$0xff]
        %v328 = vld [vmem:[%s1 + $0x20] sm:$0xff]
        %v329 = vld [vmem:[%s1 + $0x28] sm:$0xff]
        %v330 = vld [vmem:[%s1 + $0x30] sm:$0xff]
        %v331 = vld [vmem:[%s1 + $0x38] sm:$0xff]
        %v332 = vld [vmem:[%s295] sm:$0xff]
        %v333 = vld [vmem:[%s295 + $0x8] sm:$0xff]
        %v334 = vld [vmem:[%s295 + $0x10] sm:$0xff]
        %v335 = vld [vmem:[%s295 + $0x18] sm:$0xff]
        %v336 = vld [vmem:[%s2] sm:$0xff]
        %v337 = vld [vmem:[%s2 + $0x8] sm:$0xff]
        %v338 = vld [vmem:[%s2 + $0x10] sm:$0xff]
        %v339 = vld [vmem:[%s2 + $0x18] sm:$0xff]
        %v340 = vld [vmem:[%s2 + $0x20] sm:$0xff]
        %v341 = vld [vmem:[%s2 + $0x28] sm:$0xff]
        %v342 = vld [vmem:[%s2 + $0x30] sm:$0xff]
        %v343 = vld [vmem:[%s2 + $0x38] sm:$0xff]
        %345 = vset.pattern.permute.xlu0 0
        %346 = vperm.xlu0 %345, %v336
        %v347 = vpop.permute.xlu0 %346
        %350 = vset.pattern.permute.xlu0 0
        %351 = vperm.xlu0 %350, %v337
        %v352 = vpop.permute.xlu0 %351
        %355 = vset.pattern.permute.xlu0 0
        %356 = vperm.xlu0 %355, %v338
        %v357 = vpop.permute.xlu0 %356
        %360 = vset.pattern.permute.xlu0 0
        %361 = vperm.xlu0 %360, %v339
        %v362 = vpop.permute.xlu0 %361
        %365 = vset.pattern.permute.xlu0 0
        %366 = vperm.xlu0 %365, %v340
        %v367 = vpop.permute.xlu0 %366
        %370 = vset.pattern.permute.xlu0 0
        %371 = vperm.xlu0 %370, %v341
        %v372 = vpop.permute.xlu0 %371
        %375 = vset.pattern.permute.xlu0 0
        %376 = vperm.xlu0 %375, %v342
        %v377 = vpop.permute.xlu0 %376
        %380 = vset.pattern.permute.xlu0 0
        %381 = vperm.xlu0 %380, %v343
        %v382 = vpop.permute.xlu0 %381
        %vm384 = vcmask 261120
        %v386 = vsel %vm384, %v324, 0
        %v389 = vsel %vm384, %v325, 0
        %v392 = vsel %vm384, %v326, 0
        %v395 = vsel %vm384, %v327, 0
        %v398 = vsel %vm384, %v328, 0
        %v401 = vsel %vm384, %v329, 0
        %v404 = vsel %vm384, %v330, 0
        %v407 = vsel %vm384, %v331, 0
        %409 = vmatprep.subr.mxu0 0.0
        %410 = vmatpush1.msra.mxu0 0.0
        %411 = vmatprep.subr.mxu0 0.0
        %412 = vmatpush1.msra.mxu0 0.0
        %413 = vmatprep.subr.mxu0 0.0
        %414 = vmatpush1.msra.mxu0 0.0
        %415 = vmatprep.subr.mxu0 0.0
        %416 = vmatpush1.msra.mxu0 0.0
        %417 = vmatprep.subr.mxu0 0.0
        %418 = vmatpush1.msra.mxu0 0.0
        %419 = vmatprep.subr.mxu0 0.0
        %420 = vmatpush1.msra.mxu0 0.0
        %421 = vmatprep.subr.mxu0 0.0
        %422 = vmatpush1.msra.mxu0 0.0
        %423 = vmatprep.subr.mxu0 0.0
        %424 = vmatpush1.msra.mxu0 0.0
        %425 = vmatprep.subr.mxu0 0.0
        %426 = vmatpush1.msra.mxu0 0.0
        %427 = vmatprep.subr.mxu0 0.0
        %428 = vmatpush1.msra.mxu0 0.0
        %429 = vmatprep.subr.mxu0 0.0
        %430 = vmatpush1.msra.mxu0 0.0
        %431 = vmatprep.subr.mxu0 0.0
        %432 = vmatpush1.msra.mxu0 0.0
        %433 = vmatprep.subr.mxu0 0.0
        %434 = vmatpush1.msra.mxu0 %v335
        %435 = vmatprep.subr.mxu0 0.0
        %436 = vmatpush1.msra.mxu0 %v334
        %437 = vmatprep.subr.mxu0 0.0
        %438 = vmatpush1.msra.mxu0 %v333
        %439 = vmatprep.subr.mxu0 0.0
        %440 = vmatpush1.msra.mxu0 %v332
        %441 = vmatprep.subr.mxu0 0.0
        %442 = vmatpush2.msra.mxu0 0.0
        %443 = vmatprep.subr.mxu0 0.0
        %444 = vmatpush2.msra.mxu0 0.0
        %445 = vmatprep.subr.mxu0 0.0
        %446 = vmatpush2.msra.mxu0 0.0
        %447 = vmatprep.subr.mxu0 0.0
        %448 = vmatpush2.msra.mxu0 0.0
        %449 = vmatprep.subr.mxu0 0.0
        %450 = vmatpush2.msra.mxu0 0.0
        %451 = vmatprep.subr.mxu0 0.0
        %452 = vmatpush2.msra.mxu0 0.0
        %453 = vmatprep.subr.mxu0 0.0
        %454 = vmatpush2.msra.mxu0 0.0
        %455 = vmatprep.subr.mxu0 0.0
        %456 = vmatpush2.msra.mxu0 0.0
        %457 = vmatprep.subr.mxu0 0.0
        %458 = vmatpush2.msra.mxu0 0.0
        %459 = vmatprep.subr.mxu0 0.0
        %460 = vmatpush2.msra.mxu0 0.0
        %461 = vmatprep.subr.mxu0 0.0
        %462 = vmatpush2.msra.mxu0 0.0
        %463 = vmatprep.subr.mxu0 0.0
        %464 = vmatpush2.msra.mxu0 0.0
        %465 = vmatprep.subr.mxu0 0.0
        %466 = vmatpush2.msra.mxu0 0.0
        %467 = vmatprep.subr.mxu0 0.0
        %468 = vmatpush2.msra.mxu0 0.0
        %469 = vmatprep.subr.mxu0 0.0
        %470 = vmatpush2.msra.mxu0 0.0
        %471 = vmatprep.subr.mxu0 0.0
        %472 = vmatpush2.msra.mxu0 0.0
        %473 = vmatprep.mubr.f32.mxu0 0.0
        %474 = vmatmul.mubr.f32.gmra.mxu0 %v386
        %v475 = vpop.f32.mrf.mxu0
        %v476 = vadd.f32 %v347, %v475
        %v477 = vpop.f32.mrf.mxu0
        %478 = vmatprep.mubr.f32.mxu0 0.0
        %479 = vmatmul.mubr.f32.gmra.mxu0 %v389
        %v480 = vpop.f32.mrf.mxu0
        %v481 = vadd.f32 %v352, %v480
        %v482 = vpop.f32.mrf.mxu0
        %483 = vmatprep.mubr.f32.mxu0 0.0
        %484 = vmatmul.mubr.f32.gmra.mxu0 %v392
        %v485 = vpop.f32.mrf.mxu0
        %v486 = vadd.f32 %v357, %v485
        %v487 = vpop.f32.mrf.mxu0
        %488 = vmatprep.mubr.f32.mxu0 0.0
        %489 = vmatmul.mubr.f32.gmra.mxu0 %v395
        %v490 = vpop.f32.mrf.mxu0
        %v491 = vadd.f32 %v362, %v490
        %v492 = vpop.f32.mrf.mxu0
        %493 = vmatprep.mubr.f32.mxu0 0.0
        %494 = vmatmul.mubr.f32.gmra.mxu0 %v398
        %v495 = vpop.f32.mrf.mxu0
        %v496 = vadd.f32 %v367, %v495
        %v497 = vpop.f32.mrf.mxu0
        %498 = vmatprep.mubr.f32.mxu0 0.0
        %499 = vmatmul.mubr.f32.gmra.mxu0 %v401
        %v500 = vpop.f32.mrf.mxu0
        %v501 = vadd.f32 %v372, %v500
        %v502 = vpop.f32.mrf.mxu0
        %503 = vmatprep.mubr.f32.mxu0 0.0
        %504 = vmatmul.mubr.f32.gmra.mxu0 %v404
        %v505 = vpop.f32.mrf.mxu0
        %v506 = vadd.f32 %v377, %v505
        %v507 = vpop.f32.mrf.mxu0
        %508 = vmatprep.mubr.f32.mxu0 0.0
        %509 = vmatmul.mubr.f32.gmra.mxu0 %v407
        %v510 = vpop.f32.mrf.mxu0
        %v511 = vadd.f32 %v382, %v510
        %v512 = vpop.f32.mrf.mxu0
        %513 = vdwg.mxu0
        %v514 = vmul.f32 %v476, 0.5
        %v515 = vmul.f32 %v481, 0.5
        %v516 = vmul.f32 %v486, 0.5
        %v517 = vmul.f32 %v491, 0.5
        %v518 = vmul.f32 %v496, 0.5
        %v519 = vmul.f32 %v501, 0.5
        %v520 = vmul.f32 %v506, 0.5
        %v521 = vmul.f32 %v511, 0.5
        %v522 = vmul.f32 %v476, %v476
        %v523 = vmul.f32 %v481, %v481
        %v524 = vmul.f32 %v486, %v486
        %v525 = vmul.f32 %v491, %v491
        %v526 = vmul.f32 %v496, %v496
        %v527 = vmul.f32 %v501, %v501
        %v528 = vmul.f32 %v506, %v506
        %v529 = vmul.f32 %v511, %v511
        %v530 = vmul.f32 %v522, %v476
        %v531 = vmul.f32 %v523, %v481
        %v532 = vmul.f32 %v524, %v486
        %v533 = vmul.f32 %v525, %v491
        %v534 = vmul.f32 %v526, %v496
        %v535 = vmul.f32 %v527, %v501
        %v536 = vmul.f32 %v528, %v506
        %v537 = vmul.f32 %v529, %v511
        %v538 = vmul.f32 %v530, 0.044715
        %v539 = vmul.f32 %v531, 0.044715
        %v540 = vmul.f32 %v532, 0.044715
        %v541 = vmul.f32 %v533, 0.044715
        %v542 = vmul.f32 %v534, 0.044715
        %v543 = vmul.f32 %v535, 0.044715
        %v544 = vmul.f32 %v536, 0.044715
        %v545 = vmul.f32 %v537, 0.044715
        %v546 = vadd.f32 %v476, %v538
        %v547 = vadd.f32 %v481, %v539
        %v548 = vadd.f32 %v486, %v540
        %v549 = vadd.f32 %v491, %v541
        %v550 = vadd.f32 %v496, %v542
        %v551 = vadd.f32 %v501, %v543
        %v552 = vadd.f32 %v506, %v544
        %v553 = vadd.f32 %v511, %v545
        %v554 = vmul.f32 %v546, 0.7978846
        %v555 = vmul.f32 %v547, 0.7978846
        %v556 = vmul.f32 %v548, 0.7978846
        %v557 = vmul.f32 %v549, 0.7978846
        %v558 = vmul.f32 %v550, 0.7978846
        %v559 = vmul.f32 %v551, 0.7978846
        %v560 = vmul.f32 %v552, 0.7978846
        %v561 = vmul.f32 %v553, 0.7978846
        %v562 = vtanh.pop %v554
        %v563 = vtanh.pop %v555
        %v564 = vtanh.pop %v556
        %v565 = vtanh.pop %v557
        %v566 = vtanh.pop %v558
        %v567 = vtanh.pop %v559
        %v568 = vtanh.pop %v560
        %v569 = vtanh.pop %v561
        %v570 = vadd.f32 %v562, 1.0
        %v571 = vadd.f32 %v563, 1.0
        %v572 = vadd.f32 %v564, 1.0
        %v573 = vadd.f32 %v565, 1.0
        %v574 = vadd.f32 %v566, 1.0
        %v575 = vadd.f32 %v567, 1.0
        %v576 = vadd.f32 %v568, 1.0
        %v577 = vadd.f32 %v569, 1.0
        %v578 = vmul.f32 %v514, %v570
        %v579 = vmul.f32 %v515, %v571
        %v580 = vmul.f32 %v516, %v572
        %v581 = vmul.f32 %v517, %v573
        %v582 = vmul.f32 %v518, %v574
        %v583 = vmul.f32 %v519, %v575
        %v584 = vmul.f32 %v520, %v576
        %v585 = vmul.f32 %v521, %v577
        %v586 = vld [vmem:[%s3] sm:$0xff]
        %v587 = vld [vmem:[%s3 + $0x8] sm:$0xff]
        %v588 = vld [vmem:[%s3 + $0x10] sm:$0xff]
        %v589 = vld [vmem:[%s3 + $0x18] sm:$0xff]
        %v590 = vld [vmem:[%s3 + $0x20] sm:$0xff]
        %v591 = vld [vmem:[%s3 + $0x28] sm:$0xff]
        %v592 = vld [vmem:[%s3 + $0x30] sm:$0xff]
        %v593 = vld [vmem:[%s3 + $0x38] sm:$0xff]
        %v594 = vld [vmem:[%s4] sm:$0xff]
        %v595 = vld [vmem:[%s4 + $0x8] sm:$0xff]
        %v596 = vld [vmem:[%s4 + $0x10] sm:$0xff]
        %v597 = vld [vmem:[%s4 + $0x18] sm:$0xff]
        %v598 = vld [vmem:[%s4 + $0x20] sm:$0xff]
        %v599 = vld [vmem:[%s4 + $0x28] sm:$0xff]
        %v600 = vld [vmem:[%s4 + $0x30] sm:$0xff]
        %v601 = vld [vmem:[%s4 + $0x38] sm:$0xff]
        %603 = vset.pattern.permute.xlu0 0
        %604 = vperm.xlu0 %603, %v594
        %v605 = vpop.permute.xlu0 %604
        %608 = vset.pattern.permute.xlu0 0
        %609 = vperm.xlu0 %608, %v595
        %v610 = vpop.permute.xlu0 %609
        %613 = vset.pattern.permute.xlu0 0
        %614 = vperm.xlu0 %613, %v596
        %v615 = vpop.permute.xlu0 %614
        %618 = vset.pattern.permute.xlu0 0
        %619 = vperm.xlu0 %618, %v597
        %v620 = vpop.permute.xlu0 %619
        %623 = vset.pattern.permute.xlu0 0
        %624 = vperm.xlu0 %623, %v598
        %v625 = vpop.permute.xlu0 %624
        %628 = vset.pattern.permute.xlu0 0
        %629 = vperm.xlu0 %628, %v599
        %v630 = vpop.permute.xlu0 %629
        %633 = vset.pattern.permute.xlu0 0
        %634 = vperm.xlu0 %633, %v600
        %v635 = vpop.permute.xlu0 %634
        %638 = vset.pattern.permute.xlu0 0
        %639 = vperm.xlu0 %638, %v601
        %v640 = vpop.permute.xlu0 %639
        %vm642 = vcmask 523264
        %v644 = vsel %vm642, %v586, 0
        %v647 = vsel %vm642, %v587, 0
        %v650 = vsel %vm642, %v588, 0
        %v653 = vsel %vm642, %v589, 0
        %v656 = vsel %vm642, %v590, 0
        %v659 = vsel %vm642, %v591, 0
        %v662 = vsel %vm642, %v592, 0
        %v665 = vsel %vm642, %v593, 0
        %667 = vmatprep.subr.mxu0 0.0
        %668 = vmatpush1.msra.mxu0 0.0
        %669 = vmatprep.subr.mxu0 0.0
        %670 = vmatpush1.msra.mxu0 0.0
        %671 = vmatprep.subr.mxu0 0.0
        %672 = vmatpush1.msra.mxu0 0.0
        %673 = vmatprep.subr.mxu0 0.0
        %674 = vmatpush1.msra.mxu0 0.0
        %675 = vmatprep.subr.mxu0 0.0
        %676 = vmatpush1.msra.mxu0 0.0
        %677 = vmatprep.subr.mxu0 0.0
        %678 = vmatpush1.msra.mxu0 0.0
        %679 = vmatprep.subr.mxu0 0.0
        %680 = vmatpush1.msra.mxu0 0.0
        %681 = vmatprep.subr.mxu0 0.0
        %682 = vmatpush1.msra.mxu0 0.0
        %683 = vmatprep.subr.mxu0 0.0
        %684 = vmatpush1.msra.mxu0 %v585
        %685 = vmatprep.subr.mxu0 0.0
        %686 = vmatpush1.msra.mxu0 %v584
        %687 = vmatprep.subr.mxu0 0.0
        %688 = vmatpush1.msra.mxu0 %v583
        %689 = vmatprep.subr.mxu0 0.0
        %690 = vmatpush1.msra.mxu0 %v582
        %691 = vmatprep.subr.mxu0 0.0
        %692 = vmatpush1.msra.mxu0 %v581
        %693 = vmatprep.subr.mxu0 0.0
        %694 = vmatpush1.msra.mxu0 %v580
        %695 = vmatprep.subr.mxu0 0.0
        %696 = vmatpush1.msra.mxu0 %v579
        %697 = vmatprep.subr.mxu0 0.0
        %698 = vmatpush1.msra.mxu0 %v578
        %699 = vmatprep.subr.mxu0 0.0
        %700 = vmatpush2.msra.mxu0 0.0
        %701 = vmatprep.subr.mxu0 0.0
        %702 = vmatpush2.msra.mxu0 0.0
        %703 = vmatprep.subr.mxu0 0.0
        %704 = vmatpush2.msra.mxu0 0.0
        %705 = vmatprep.subr.mxu0 0.0
        %706 = vmatpush2.msra.mxu0 0.0
        %707 = vmatprep.subr.mxu0 0.0
        %708 = vmatpush2.msra.mxu0 0.0
        %709 = vmatprep.subr.mxu0 0.0
        %710 = vmatpush2.msra.mxu0 0.0
        %711 = vmatprep.subr.mxu0 0.0
        %712 = vmatpush2.msra.mxu0 0.0
        %713 = vmatprep.subr.mxu0 0.0
        %714 = vmatpush2.msra.mxu0 0.0
        %715 = vmatprep.subr.mxu0 0.0
        %716 = vmatpush2.msra.mxu0 0.0
        %717 = vmatprep.subr.mxu0 0.0
        %718 = vmatpush2.msra.mxu0 0.0
        %719 = vmatprep.subr.mxu0 0.0
        %720 = vmatpush2.msra.mxu0 0.0
        %721 = vmatprep.subr.mxu0 0.0
        %722 = vmatpush2.msra.mxu0 0.0
        %723 = vmatprep.subr.mxu0 0.0
        %724 = vmatpush2.msra.mxu0 0.0
        %725 = vmatprep.subr.mxu0 0.0
        %726 = vmatpush2.msra.mxu0 0.0
        %727 = vmatprep.subr.mxu0 0.0
        %728 = vmatpush2.msra.mxu0 0.0
        %729 = vmatprep.subr.mxu0 0.0
        %730 = vmatpush2.msra.mxu0 0.0
        %731 = vmatprep.mubr.f32.mxu0 0.0
        %732 = vmatmul.mubr.f32.gmra.mxu0 %v644
        %v733 = vpop.f32.mrf.mxu0
        %v734 = vadd.f32 %v605, %v733
        %v735 = vpop.f32.mrf.mxu0
        %736 = vmatprep.mubr.f32.mxu0 0.0
        %737 = vmatmul.mubr.f32.gmra.mxu0 %v647
        %v738 = vpop.f32.mrf.mxu0
        %v739 = vadd.f32 %v610, %v738
        %v740 = vpop.f32.mrf.mxu0
        %741 = vmatprep.mubr.f32.mxu0 0.0
        %742 = vmatmul.mubr.f32.gmra.mxu0 %v650
        %v743 = vpop.f32.mrf.mxu0
        %v744 = vadd.f32 %v615, %v743
        %v745 = vpop.f32.mrf.mxu0
        %746 = vmatprep.mubr.f32.mxu0 0.0
        %747 = vmatmul.mubr.f32.gmra.mxu0 %v653
        %v748 = vpop.f32.mrf.mxu0
        %v749 = vadd.f32 %v620, %v748
        %v750 = vpop.f32.mrf.mxu0
        %751 = vmatprep.mubr.f32.mxu0 0.0
        %752 = vmatmul.mubr.f32.gmra.mxu0 %v656
        %v753 = vpop.f32.mrf.mxu0
        %v754 = vadd.f32 %v625, %v753
        %v755 = vpop.f32.mrf.mxu0
        %756 = vmatprep.mubr.f32.mxu0 0.0
        %757 = vmatmul.mubr.f32.gmra.mxu0 %v659
        %v758 = vpop.f32.mrf.mxu0
        %v759 = vadd.f32 %v630, %v758
        %v760 = vpop.f32.mrf.mxu0
        %761 = vmatprep.mubr.f32.mxu0 0.0
        %762 = vmatmul.mubr.f32.gmra.mxu0 %v662
        %v763 = vpop.f32.mrf.mxu0
        %v764 = vadd.f32 %v635, %v763
        %v765 = vpop.f32.mrf.mxu0
        %766 = vmatprep.mubr.f32.mxu0 0.0
        %767 = vmatmul.mubr.f32.gmra.mxu0 %v665
        %v768 = vpop.f32.mrf.mxu0
        %v769 = vadd.f32 %v640, %v768
        %v770 = vpop.f32.mrf.mxu0
        %771 = vdwg.mxu0
        %v772 = vmul.f32 %v734, 0.5
        %v773 = vmul.f32 %v739, 0.5
        %v774 = vmul.f32 %v744, 0.5
        %v775 = vmul.f32 %v749, 0.5
        %v776 = vmul.f32 %v754, 0.5
        %v777 = vmul.f32 %v759, 0.5
        %v778 = vmul.f32 %v764, 0.5
        %v779 = vmul.f32 %v769, 0.5
        %v780 = vmul.f32 %v734, %v734
        %v781 = vmul.f32 %v739, %v739
        %v782 = vmul.f32 %v744, %v744
        %v783 = vmul.f32 %v749, %v749
        %v784 = vmul.f32 %v754, %v754
        %v785 = vmul.f32 %v759, %v759
        %v786 = vmul.f32 %v764, %v764
        %v787 = vmul.f32 %v769, %v769
        %v788 = vmul.f32 %v780, %v734
        %v789 = vmul.f32 %v781, %v739
        %v790 = vmul.f32 %v782, %v744
        %v791 = vmul.f32 %v783, %v749
        %v792 = vmul.f32 %v784, %v754
        %v793 = vmul.f32 %v785, %v759
        %v794 = vmul.f32 %v786, %v764
        %v795 = vmul.f32 %v787, %v769
        %v796 = vmul.f32 %v788, 0.044715
        %v797 = vmul.f32 %v789, 0.044715
        %v798 = vmul.f32 %v790, 0.044715
        %v799 = vmul.f32 %v791, 0.044715
        %v800 = vmul.f32 %v792, 0.044715
        %v801 = vmul.f32 %v793, 0.044715
        %v802 = vmul.f32 %v794, 0.044715
        %v803 = vmul.f32 %v795, 0.044715
        %v804 = vadd.f32 %v734, %v796
        %v805 = vadd.f32 %v739, %v797
        %v806 = vadd.f32 %v744, %v798
        %v807 = vadd.f32 %v749, %v799
        %v808 = vadd.f32 %v754, %v800
        %v809 = vadd.f32 %v759, %v801
        %v810 = vadd.f32 %v764, %v802
        %v811 = vadd.f32 %v769, %v803
        %v812 = vmul.f32 %v804, 0.7978846
        %v813 = vmul.f32 %v805, 0.7978846
        %v814 = vmul.f32 %v806, 0.7978846
        %v815 = vmul.f32 %v807, 0.7978846
        %v816 = vmul.f32 %v808, 0.7978846
        %v817 = vmul.f32 %v809, 0.7978846
        %v818 = vmul.f32 %v810, 0.7978846
        %v819 = vmul.f32 %v811, 0.7978846
        %v820 = vtanh.pop %v812
        %v821 = vtanh.pop %v813
        %v822 = vtanh.pop %v814
        %v823 = vtanh.pop %v815
        %v824 = vtanh.pop %v816
        %v825 = vtanh.pop %v817
        %v826 = vtanh.pop %v818
        %v827 = vtanh.pop %v819
        %v828 = vadd.f32 %v820, 1.0
        %v829 = vadd.f32 %v821, 1.0
        %v830 = vadd.f32 %v822, 1.0
        %v831 = vadd.f32 %v823, 1.0
        %v832 = vadd.f32 %v824, 1.0
        %v833 = vadd.f32 %v825, 1.0
        %v834 = vadd.f32 %v826, 1.0
        %v835 = vadd.f32 %v827, 1.0
        %v836 = vmul.f32 %v772, %v828
        %v837 = vmul.f32 %v773, %v829
        %v838 = vmul.f32 %v774, %v830
        %v839 = vmul.f32 %v775, %v831
        %v840 = vmul.f32 %v776, %v832
        %v841 = vmul.f32 %v777, %v833
        %v842 = vmul.f32 %v778, %v834
        %v843 = vmul.f32 %v779, %v835
        %v844 = vld [vmem:[%s5] sm:$0xf]
        %v845 = vld [vmem:[%s6] sm:$0xf]
        %847 = vset.pattern.permute.xlu0 0
        %848 = vperm.xlu0 %847, %v845
        %v849 = vpop.permute.xlu0 %848
        %v852 = vsel %vm642, %v844, 0
        %854 = vmatprep.subr.mxu0 0.0
        %855 = vmatpush1.msra.mxu0 0.0
        %856 = vmatprep.subr.mxu0 0.0
        %857 = vmatpush1.msra.mxu0 0.0
        %858 = vmatprep.subr.mxu0 0.0
        %859 = vmatpush1.msra.mxu0 0.0
        %860 = vmatprep.subr.mxu0 0.0
        %861 = vmatpush1.msra.mxu0 0.0
        %862 = vmatprep.subr.mxu0 0.0
        %863 = vmatpush1.msra.mxu0 0.0
        %864 = vmatprep.subr.mxu0 0.0
        %865 = vmatpush1.msra.mxu0 0.0
        %866 = vmatprep.subr.mxu0 0.0
        %867 = vmatpush1.msra.mxu0 0.0
        %868 = vmatprep.subr.mxu0 0.0
        %869 = vmatpush1.msra.mxu0 0.0
        %870 = vmatprep.subr.mxu0 0.0
        %871 = vmatpush1.msra.mxu0 %v843
        %872 = vmatprep.subr.mxu0 0.0
        %873 = vmatpush1.msra.mxu0 %v842
        %874 = vmatprep.subr.mxu0 0.0
        %875 = vmatpush1.msra.mxu0 %v841
        %876 = vmatprep.subr.mxu0 0.0
        %877 = vmatpush1.msra.mxu0 %v840
        %878 = vmatprep.subr.mxu0 0.0
        %879 = vmatpush1.msra.mxu0 %v839
        %880 = vmatprep.subr.mxu0 0.0
        %881 = vmatpush1.msra.mxu0 %v838
        %882 = vmatprep.subr.mxu0 0.0
        %883 = vmatpush1.msra.mxu0 %v837
        %884 = vmatprep.subr.mxu0 0.0
        %885 = vmatpush1.msra.mxu0 %v836
        %886 = vmatprep.subr.mxu0 0.0
        %887 = vmatpush2.msra.mxu0 0.0
        %888 = vmatprep.subr.mxu0 0.0
        %889 = vmatpush2.msra.mxu0 0.0
        %890 = vmatprep.subr.mxu0 0.0
        %891 = vmatpush2.msra.mxu0 0.0
        %892 = vmatprep.subr.mxu0 0.0
        %893 = vmatpush2.msra.mxu0 0.0
        %894 = vmatprep.subr.mxu0 0.0
        %895 = vmatpush2.msra.mxu0 0.0
        %896 = vmatprep.subr.mxu0 0.0
        %897 = vmatpush2.msra.mxu0 0.0
        %898 = vmatprep.subr.mxu0 0.0
        %899 = vmatpush2.msra.mxu0 0.0
        %900 = vmatprep.subr.mxu0 0.0
        %901 = vmatpush2.msra.mxu0 0.0
        %902 = vmatprep.subr.mxu0 0.0
        %903 = vmatpush2.msra.mxu0 0.0
        %904 = vmatprep.subr.mxu0 0.0
        %905 = vmatpush2.msra.mxu0 0.0
        %906 = vmatprep.subr.mxu0 0.0
        %907 = vmatpush2.msra.mxu0 0.0
        %908 = vmatprep.subr.mxu0 0.0
        %909 = vmatpush2.msra.mxu0 0.0
        %910 = vmatprep.subr.mxu0 0.0
        %911 = vmatpush2.msra.mxu0 0.0
        %912 = vmatprep.subr.mxu0 0.0
        %913 = vmatpush2.msra.mxu0 0.0
        %914 = vmatprep.subr.mxu0 0.0
        %915 = vmatpush2.msra.mxu0 0.0
        %916 = vmatprep.subr.mxu0 0.0
        %917 = vmatpush2.msra.mxu0 0.0
        %918 = vmatprep.mubr.f32.mxu0 0.0
        %919 = vmatmul.mubr.f32.gmra.mxu0 %v852
        %v920 = vpop.f32.mrf.mxu0
        %v921 = vadd.f32 %v849, %v920
        %v922 = vpop.f32.mrf.mxu0
        %923 = vdwg.mxu0
        %924 = vst [vmem:[%s323] sm:$0xf] %v921
        %s925 = sand.u32 %s181, 1
        %s926 = scalar_lea.sflag [#allocation4], %s925
        %s927 = sand.u32 %s181, 1
        %s928 = smul.addr %s927, 4
        %s929 = scalar_lea.vmem [#allocation3], %s928
        // Predicated region
        $region87: #{tpu_custom_call.1} parent=81 // pred_check
          %p930 = pneg %p191
        $region88: #{tpu_custom_call.1} parent=81 // pred_check_branch
          %932 = sbr.rel (%p930) target = $region90
        $region89: #{tpu_custom_call.1} parent=81 // pred_region
          %s934 = ssub.s32 64, 64
          %935 = vsyncadd %s926, %s934
          %s936 = smul.addr %s21, 64
          %s937 = scalar_lea.hbm %s7, %s936
          %s939 = sshll.u32 %s929, 4
          %s940 = int_to_ptr.vmem [resolvable:$true] %s939
          %942 = dma.vmem_to_hbm [thread:$0]  %s940, 64, %s937, %s926
        $region90: #{tpu_custom_call.1} parent=81 // pred_fallthru
          _
      $region82: #{tpu_custom_call.1} parent=5 // pred_fallthru
        _
      %p943 = scmp.le.s32.totalorder 2, %s16
      // Predicated region
      $region91: #{tpu_custom_call.1} parent=5 // pred_check
        %p944 = pneg %p943
      $region92: #{tpu_custom_call.1} parent=5 // pred_check_branch
        %946 = sbr.rel (%p944) target = $region94
      $region93: #{tpu_custom_call.1} parent=5 // pred_region
        %s947 = ssub.s32 %s16, 2
        // Predicated region
        $region95: #{tpu_custom_call.1} parent=93 // pred_check
          %p948 = pneg %p197
        $region96: #{tpu_custom_call.1} parent=93 // pred_check_branch
          %950 = sbr.rel (%p948) target = $region98
        $region97: #{tpu_custom_call.1} parent=93 // pred_region
          %s951 = sand.u32 %s182, 1
          %s952 = scalar_lea.sflag [#allocation4], %s951
          %s953 = sand.u32 %s182, 1
          %s954 = smul.addr %s953, 4
          %s955 = scalar_lea.vmem [#allocation3], %s954
          %956 = dma.done %s952, 64
        $region98: #{tpu_custom_call.1} parent=93 // pred_fallthru
          _
      $region94: #{tpu_custom_call.1} parent=5 // pred_fallthru
        _
    $region6: #{tpu_custom_call.1} parent=1 // loop_footer
      %s20 = sadd.s32 1, %s16
    $region7: #{tpu_custom_call.1} parent=1 // loop_footer_branch
      %15 = sbr.rel target = $region3
    $region8: #{tpu_custom_call.1} parent=1 // loop_exit
      _
    %957 = vsyncpa [#allocation4], 1
    %s958 = scalar_lea.sflag [#allocation4], 1
    %959 = vsyncpa %s958, 1

</llo_original>
